<compile_context>
chip_gen: v5e
topology: v5e:2x2
jax: 0.10.0
libtpu: 0.0.40
codegen_flags: <defaults>
</compile_context>

<pallas_src>
import jax
import jax.numpy as jnp
from jax import lax
from jax.experimental import pallas as pl
from jax.experimental.pallas import tpu as pltpu

_TARGET_BLOCK_BYTES = 4 << 20           # ~4 MiB of input per grid step
_VMEM_LIMIT_BYTES = 48 * 1024 * 1024    # 2x block (double-buffer) + f32 temps
_LANE_CHOICES = (512, 384, 256, 128)    # preferred lane-dense widths


def _make_sumsq_kernel(tile_r, lanes, acc_rows, groups, num_tiles, inner_steps,
                       rows_in_last, needs_guard):
    """Partial sum-of-squares over row tiles of an (n_rows, lanes) slab."""
    last = num_tiles - 1
    partial_last = rows_in_last < tile_r

    def kernel(x_ref, o_ref):
        k = pl.program_id(1)

        # New outer (per-core) partial sum -> reset the resident accumulator.
        @pl.when(k == 0)
        def _():
            o_ref[...] = jnp.zeros_like(o_ref)

        def accumulate(x):
            sq = x * x                                           # VPU
            if groups > 1:
                # Fold sublane-groups of 8 rows (layout-free reshape: the inner
                # factor matches the f32 sublane tiling); pure VPU adds.
                # TODO(synk): if a bundle dump ever shows VALU as the binding
                # slot (bf16 on v7x), move this fold onto the idle MXU via
                # jnp.dot(ones((8, tile_r), f32), sq).
                sq = jnp.sum(sq.reshape(groups, acc_rows, lanes), axis=0)
            o_ref[...] += sq

        if not needs_guard:
            # Steady state: cast + square + accumulate, no masking at all.
            accumulate(x_ref[...].astype(jnp.float32))
        else:
            t = pl.program_id(0) * inner_steps + k               # logical tile

            @pl.when(t < last)
            def _():                                             # full tiles
                accumulate(x_ref[...].astype(jnp.float32))

            @pl.when(t == last)
            def _():                                             # ragged tile
                x = x_ref[...].astype(jnp.float32)
                if partial_last:
                    # Cheap (tile_r, 1) row predicate; broadcast by the select.
                    row = lax.broadcasted_iota(jnp.int32, (tile_r, 1), 0)
                    x = jnp.where(row < rows_in_last, x, 0.0)
                accumulate(x)
            # t > last: padded grid point (odd tile count split across the two
            # TensorCores); its DMA re-reads a valid tile (clamped index) and
            # the accumulation is simply skipped.

    return kernel


def _sumsq_pallas(x2d: jax.Array) -> jax.Array:
    """Sum of squares of a 2-D slab via a streaming Pallas reduction."""
    n_rows, lanes = x2d.shape
    itemsize = x2d.dtype.itemsize
    lanes_padded = ((lanes + 127) // 128) * 128      # VMEM footprint per row

    rows_per_block = (_TARGET_BLOCK_BYTES // max(1, lanes_padded * itemsize)) // 8 * 8
    rows_per_block = max(8, rows_per_block)

    if n_rows <= rows_per_block:
        tile_r = n_rows                              # single block == full dims
    else:
        tile_r = rows_per_block                      # multiple of 8

    num_tiles = pl.cdiv(n_rows, tile_r)
    rows_in_last = n_rows - (num_tiles - 1) * tile_r

    # Always split >=2 tiles into two partial streams so a v7x megacore keeps
    # both TensorCores busy (ceil split; padded step is skipped). On single-TC
    # chips this degenerates to the same sequential loop.
    num_parallel = 2 if num_tiles >= 2 else 1
    inner_steps = pl.cdiv(num_tiles, num_parallel)
    padded_grid = num_parallel * inner_steps > num_tiles

    if tile_r >= 8 and tile_r % 8 == 0:
        acc_rows, groups = 8, tile_r // 8
    else:
        acc_rows, groups = tile_r, 1

    needs_guard = padded_grid or (rows_in_last < tile_r)

    if padded_grid:
        def in_map(p, k):
            return (jnp.minimum(p * inner_steps + k, num_tiles - 1), 0)
    else:
        def in_map(p, k):
            return (p * inner_steps + k, 0)

    kernel = _make_sumsq_kernel(tile_r, lanes, acc_rows, groups, num_tiles,
                                inner_steps, rows_in_last, needs_guard)

    out_bytes = num_parallel * acc_rows * lanes * 4
    partials = pl.pallas_call(
        kernel,
        out_shape=jax.ShapeDtypeStruct((num_parallel * acc_rows, lanes),
                                       jnp.float32),
        grid_spec=pltpu.PrefetchScalarGridSpec(
            num_scalar_prefetch=0,
            grid=(num_parallel, inner_steps),
            in_specs=[pl.BlockSpec((tile_r, lanes), in_map)],
            out_specs=pl.BlockSpec((acc_rows, lanes), lambda p, k: (p, 0)),
        ),
        compiler_params=pltpu.CompilerParams(
            # Outer axis: independent partial sums (v7x megacore sharding);
            # inner axis: the sequential reduction.
            dimension_semantics=("parallel", "arbitrary"),
            vmem_limit_bytes=_VMEM_LIMIT_BYTES,
        ),
        cost_estimate=pl.CostEstimate(
            flops=2 * n_rows * lanes,
            transcendentals=0,
            bytes_accessed=n_rows * lanes * itemsize + out_bytes,
        ),
    )(x2d)

    # Tiny final combine: one cross-lane reduce over the (P*8, C) partials.
    return jnp.sum(partials)


@jax.jit
def feature_regularization_loss(bn_features: jax.Array) -> jax.Array:
    """L2 (Frobenius) norm of bn_features == torch.norm(bn_features, p=2)."""
    if bn_features.size == 0:
        return jnp.float32(0.0)

    total = bn_features.size
    flat = bn_features.reshape(-1)       # contiguous row-major bitcast, no copy

    # Prefer a lane-dense slab (last dim a multiple of 128) when it is copy-free.
    x2d = None
    for c in _LANE_CHOICES:
        if total % c == 0:
            x2d = flat.reshape(total // c, c)
            break
    if x2d is None:
        # Fall back to the native trailing dim (possibly strided DMA, but never
        # a wrapper-side slice copy of the input).
        if bn_features.ndim == 0:
            x2d = flat.reshape(1, 1)
        else:
            x2d = flat.reshape(-1, bn_features.shape[-1])

    # Result kept in float32 (torch.norm on fp16/bf16 returns the input dtype;
    # f32 is numerically preferable here).
    return jnp.sqrt(_sumsq_pallas(x2d))


if __name__ == "__main__":
    key0, key1 = jax.random.split(jax.random.PRNGKey(0))

    # Small, module-consistent shape: batch=2, hidden=32 BN features
    # (exercises the native-layout single-block path).
    bn_features = jax.random.normal(key0, (2, 32), dtype=jnp.float32)
    loss = feature_regularization_loss(bn_features)
    jax.block_until_ready(loss)
    ref = jnp.sqrt(jnp.sum(bn_features.astype(jnp.float32) ** 2))
    assert jnp.allclose(loss, ref, rtol=1e-5, atol=1e-5), (loss, ref)

    # Moderate check exercising the lane-dense path with multiple tiles, an odd
    # tile count (padded dual-core split + skipped step), a ragged last tile,
    # and bf16 input with f32 in-kernel accumulation.
    feats2 = jax.random.normal(key1, (8195, 512), dtype=jnp.float32).astype(jnp.bfloat16)
    loss2 = feature_regularization_loss(feats2)
    jax.block_until_ready(loss2)
    ref2 = jnp.sqrt(jnp.sum(feats2.astype(jnp.float32) ** 2))
    assert jnp.allclose(loss2, ref2, rtol=1e-4, atol=1e-4), (loss2, ref2)

    print("KERNEL_OK")
</pallas_src>

<mosaic_0001>
module attributes {stable_mosaic.version = 11 : i64} {
  func.func @kernel(%arg0: i32, %arg1: i32, %arg2: memref<2x32xf32, #tpu.memory_space<vmem>>, %arg3: memref<2x32xf32, #tpu.memory_space<vmem>>) attributes {dimension_semantics = [#tpu.dimension_semantics<parallel>, #tpu.dimension_semantics<arbitrary>], iteration_bounds = array<i64: 1, 1>, scalar_prefetch = 0 : i64, scratch_operands = 0 : i64, tpu.core_type = #tpu.core_type<tc>, window_params = [{transform_indices = @transform_0, window_bounds = array<i64: 2, 32>}, {transform_indices = @transform_1, window_bounds = array<i64: 2, 32>}]} {
    %c0_i32 = arith.constant 0 : i32
    %0 = arith.cmpi eq, %arg1, %c0_i32 : i32
    %1 = arith.extui %0 : i1 to i32
    %c0_i32_0 = arith.constant 0 : i32
    %2 = arith.cmpi ne, %1, %c0_i32_0 : i32
    scf.if %2 {
      %cst = arith.constant 0.000000e+00 : f32
      %8 = vector.broadcast %cst : f32 to vector<2x32xf32>
      %c0_6 = arith.constant 0 : index
      %c0_7 = arith.constant 0 : index
      %9 = vector.load %arg3[%c0_6, %c0_7] : memref<2x32xf32, #tpu.memory_space<vmem>>, vector<2x32xf32>
      tpu.vector_store %arg3[%c0_6, %c0_7], %8 {strides = array<i32>} : memref<2x32xf32, #tpu.memory_space<vmem>>, vector<2x32xf32>,
    } else {
    }
    %c0 = arith.constant 0 : index
    %c0_1 = arith.constant 0 : index
    %3 = vector.load %arg2[%c0, %c0_1] : memref<2x32xf32, #tpu.memory_space<vmem>>, vector<2x32xf32>
    %4 = arith.mulf %3, %3 : vector<2x32xf32>
    %c0_2 = arith.constant 0 : index
    %c0_3 = arith.constant 0 : index
    %5 = vector.load %arg3[%c0_2, %c0_3] : memref<2x32xf32, #tpu.memory_space<vmem>>, vector<2x32xf32>
    %6 = arith.addf %5, %4 : vector<2x32xf32>
    %c0_4 = arith.constant 0 : index
    %c0_5 = arith.constant 0 : index
    %7 = vector.load %arg3[%c0_4, %c0_5] : memref<2x32xf32, #tpu.memory_space<vmem>>, vector<2x32xf32>
    tpu.vector_store %arg3[%c0_4, %c0_5], %6 {strides = array<i32>} : memref<2x32xf32, #tpu.memory_space<vmem>>, vector<2x32xf32>,
    return
  }
  func.func @transform_0(%arg0: i32, %arg1: i32) -> (i32, i32) {
    %c1_i32 = arith.constant 1 : i32
    %0 = arith.muli %arg0, %c1_i32 : i32
    %1 = arith.addi %0, %arg1 : i32
    %c0_i32 = arith.constant 0 : i32
    %c0_i32_0 = arith.constant 0 : i32
    return %1, %c0_i32 : i32, i32
  }
  func.func @transform_1(%arg0: i32, %arg1: i32) -> (i32, i32) {
    %c0_i32 = arith.constant 0 : i32
    %c0_i32_0 = arith.constant 0 : i32
    return %arg0, %c0_i32 : i32, i32
  }
}

</mosaic_0001>

<llo_original>
// kernel: feature_regularization_loss.1
$region0: #{feature_regularization_loss.1}
  #allocation0 [shape = 'u32[]', space=smem, size = 0x4, offset = 0x4, fixed_abs, tag = 'smem constant byte address 0x4 - core index']
  #allocation1 [shape = 'u32[72,128]{1,0:T(1,128)}', space=vmem, size = 0x9000, scoped, tag = 'internal scratch']
  %s0 = inlined_call_operand.hbm [shape: f32[2,32], index: 0, kind: input, shape index: {}]
  %s1 = inlined_call_operand.vmem [shape: f32[2,32], index: 1, kind: output, shape index: {}]
  %s2 = sld [smem:[#allocation0]]
  $region22: #{feature_regularization_loss.1} parent=0
    _
  %s4 = ssub.s32 1, %s2
  %s5 = scalar_select 0, %s4, %s2
  $region1: #{feature_regularization_loss.1} parent=0
    #allocation2 [shape = 'u8[1024]{0}', space=vmem, size = 0x400, scoped, tag = 'input window, operand 0, single buffered']
    #allocation3 [shape = 's32[1]{0}', space=sflag, size = 0x4, scoped, tag = 'scoped memory for feature_regularization_loss.1']
    %6 = vsyncpa [#allocation3], 0
    // Predicated region
    $region2: #{feature_regularization_loss.1} parent=1 // pred_check
      _
    $region3: #{feature_regularization_loss.1} parent=1 // pred_check_branch
      %8 = sbr.rel (0) target = $region5
    $region4: #{feature_regularization_loss.1} parent=1 // pred_region
      %s9 = sadd.s32 0, 0
      %11 = vsyncadd [#allocation3], 0
      %s12 = smul.addr %s9, 2
      %s13 = scalar_lea.hbm %s0, %s12
      %s15 = sshll.u32 %s13, 4
      %s16 = int_to_ptr.hbm [resolvable:$true] %s15
      %s17 = sshll.u32 [#allocation2], 4
      %s18 = int_to_ptr.vmem [resolvable:$true] %s17
      %20 = dma.hbm_to_vmem [thread:$0]  %s16, 32, %s18, [#allocation3]
    $region5: #{feature_regularization_loss.1} parent=1 // pred_fallthru
      _
    // Predicated region
    $region6: #{feature_regularization_loss.1} parent=1 // pred_check
      _
    $region7: #{feature_regularization_loss.1} parent=1 // pred_check_branch
      %22 = sbr.rel (0) target = $region9
    $region8: #{feature_regularization_loss.1} parent=1 // pred_region
      %24 = dma.done [#allocation3], 32
    $region9: #{feature_regularization_loss.1} parent=1 // pred_fallthru
      _
    %s25 = sadd.s32 0, 0
    %p26 = scmp.eq.s32.totalorder 0, 0
    // Predicated region
    $region10: #{feature_regularization_loss.1} parent=1 // pred_check
      %p27 = pneg %p26
    $region11: #{feature_regularization_loss.1} parent=1 // pred_check_branch
      %29 = sbr.rel (%p27) target = $region13
    $region12: #{feature_regularization_loss.1} parent=1 // pred_region
      %vm30 = vcmask 254976
      %31 = vst.msk [vmem:[%s1] sm:$0x3] %vm30, 0.0
    $region13: #{feature_regularization_loss.1} parent=1 // pred_fallthru
      _
    %v32 = vld [vmem:[#allocation2] sm:$0x3]
    %v33 = vmul.f32 %v32, %v32
    %v34 = vld [vmem:[%s1] sm:$0x3]
    %v35 = vadd.f32 %v34, %v33
    %vm36 = vcmask 254976
    %37 = vst.msk [vmem:[%s1] sm:$0x3] %vm36, %v35
    // Predicated region
    $region14: #{feature_regularization_loss.1} parent=1 // pred_check
      _
    $region15: #{feature_regularization_loss.1} parent=1 // pred_check_branch
      %39 = sbr.rel (0) target = $region17
    $region16: #{feature_regularization_loss.1} parent=1 // pred_region
      _
    $region17: #{feature_regularization_loss.1} parent=1 // pred_fallthru
      _
    // Predicated region
    $region18: #{feature_regularization_loss.1} parent=1 // pred_check
      _
    $region19: #{feature_regularization_loss.1} parent=1 // pred_check_branch
      %41 = sbr.rel (0) target = $region21
    $region20: #{feature_regularization_loss.1} parent=1 // pred_region
      _
    $region21: #{feature_regularization_loss.1} parent=1 // pred_fallthru
      _
    %42 = vsyncpa [#allocation3], 1

</llo_original>
